<compile_context>
chip_gen: v7x
topology: tpu7x:2x2x1
jax: 0.10.0
libtpu: 0.0.40
codegen_flags: <defaults>
</compile_context>

<pallas_src>
import functools
import math

import jax
import jax.numpy as jnp
from jax.experimental import pallas as pl
from jax.experimental.pallas import tpu as pltpu

_LANES = 128
_MAX_BLOCK_ROWS = 1024  # keeps per-step in+out f32 tiles (double-buffered) ~1.2 MiB


def _round_up(x, m):
    return ((x + m - 1) // m) * m


def _sine_encoding_kernel(e_ref, expd_ref, expw_ref, w_ref, o_ref):
    # e_ref    : [br, PA]  packed eigenvalues (P per row) + ones column (+ zero pad)
    # expd_ref : [PA, W]   block-diag(100*div_ext) rows + phase row (pi/2 on cos half)
    # expw_ref : [PA, W]   block-diag(w_e) rows + bias row
    # w_ref    : [W,  W]   block-diag [w_sin; w_cos] slice of the Linear weight
    # o_ref    : [br, W]   packed output
    e = e_ref[...]

    # Expansion + scale + phase in one MXU matmul (replaces the HBM-expanded e and
    # the per-element VPU multiply/add): arg[r, p*H+j] = e[r,p]*100*div[j%H] + phase[j]
    arg = jnp.dot(e, expd_ref[...], preferred_element_type=jnp.float32)

    # One transcendental covers both halves: sin(x) and cos(x) = sin(x + pi/2).
    s = jnp.sin(arg)

    out = jnp.dot(s, w_ref[...], preferred_element_type=jnp.float32)
    # e-column of the Linear plus bias, also folded onto the MXU (MXU has slack).
    out = out + jnp.dot(e, expw_ref[...], preferred_element_type=jnp.float32)
    o_ref[...] = out.astype(o_ref.dtype)


def _plan_grid(rows, w):
    # Cap tile rows so in+out tiles stay small even for large H (fallback path).
    max_br = max(8, min(_MAX_BLOCK_ROWS, (_MAX_BLOCK_ROWS * _LANES) // max(w, _LANES)))
    max_br = _round_up(max_br, 8)
    if rows <= max_br:
        return _round_up(rows, 8), 1
    steps = -(-rows // max_br)
    if steps % 2:
        steps += 1  # even step count keeps v7x's two TensorCores balanced
    block_rows = _round_up(-(-rows // steps), 8)
    return block_rows, steps


@functools.partial(jax.jit, static_argnames=("hidden_dim", "block_rows"))
def sine_encoding(e, weight, bias, *, hidden_dim, block_rows=None):
    """e: [N] f32; weight: [H, H+1] (PyTorch nn.Linear layout); bias: [H] -> [N, H]."""
    N = e.shape[0]
    H = hidden_dim
    assert H >= 2 and H % 2 == 0, "hidden_dim must be even"
    H2 = H // 2

    # Lane-pack factor: P logical rows per 128-lane vector row when H divides 128.
    P = _LANES // H if (H <= _LANES and _LANES % H == 0) else 1
    W = H * P
    PA = _round_up(P + 1, 8)  # packed-e lanes: P eigenvalues + ones column (+ pad)

    rows = -(-N // P)
    if block_rows is None:
        block_rows, steps = _plan_grid(rows, W)
    else:
        block_rows = _round_up(block_rows, 8)
        steps = -(-rows // block_rows)
    rows_p = block_rows * steps
    n_pad = rows_p * P

    # ---- parameter / constant glue (tiny; fused inside this jit) ----
    f32 = jnp.float32
    div = jnp.exp(jnp.arange(0, H, 2, dtype=f32) * (-math.log(10000.0) / H))
    div100 = jnp.concatenate([div, div]) * 100.0                        # [H]
    phase = jnp.concatenate([jnp.zeros((H2,), f32),
                             jnp.full((H2,), jnp.pi / 2, f32)])         # [H]

    wt = weight.astype(f32).T                                           # [H+1, H]
    w_e, w_sc = wt[0], wt[1:]                                           # [H], [H, H]
    b = bias.astype(f32)

    eye_p = jnp.eye(P, dtype=f32)
    expd = jnp.concatenate([jnp.kron(eye_p, div100[None, :]),
                            jnp.tile(phase, P)[None, :]], axis=0)       # [P+1, W]
    expw = jnp.concatenate([jnp.kron(eye_p, w_e[None, :]),
                            jnp.tile(b, P)[None, :]], axis=0)           # [P+1, W]
    expd = jnp.pad(expd, ((0, PA - P - 1), (0, 0)))                     # [PA, W]
    expw = jnp.pad(expw, ((0, PA - P - 1), (0, 0)))                     # [PA, W]
    w_bd = jnp.kron(eye_p, w_sc)                                        # [W, W] block-diag

    # Compact lane-packed eigenvalues (+ ones column): ~PA/W of the output bytes.
    e_pad = jnp.pad(e.astype(f32), (0, n_pad - N))
    e_aug = jnp.concatenate(
        [e_pad.reshape(rows_p, P), jnp.ones((rows_p, 1), f32)], axis=1)
    e_aug = jnp.pad(e_aug, ((0, 0), (0, PA - P - 1)))                   # [rows_p, PA]

    out_packed = pl.pallas_call(
        _sine_encoding_kernel,
        out_shape=jax.ShapeDtypeStruct((rows_p, W), f32),
        grid_spec=pltpu.PrefetchScalarGridSpec(
            num_scalar_prefetch=0,
            grid=(steps,),
            in_specs=[
                pl.BlockSpec((block_rows, PA), lambda i: (i, 0)),  # packed e (tiny)
                pl.BlockSpec((PA, W), lambda i: (0, 0)),           # div/phase expansion
                pl.BlockSpec((PA, W), lambda i: (0, 0)),           # w_e/bias expansion
                pl.BlockSpec((W, W), lambda i: (0, 0)),            # block-diag weight
            ],
            out_specs=pl.BlockSpec((block_rows, W), lambda i: (i, 0)),
        ),
        compiler_params=pltpu.CompilerParams(
            dimension_semantics=("parallel",)),
    )(e_aug, expd, expw, w_bd)

    # (rows_p, P*H) f32 row-major == (rows_p*P, H): free reshape; drop pad rows.
    return out_packed.reshape(rows_p * P, H)[:N]


def sine_encoding_ref(e, weight, bias, *, hidden_dim):
    H = hidden_dim
    ee = e * 100.0
    div = jnp.exp(jnp.arange(0, H, 2, dtype=jnp.float32) * (-math.log(10000.0) / H))
    pe = ee[:, None] * div[None, :]
    eeig = jnp.concatenate([e[:, None], jnp.sin(pe), jnp.cos(pe)], axis=1)
    return eeig @ weight.T + bias


if __name__ == "__main__":
    hidden_dim = 32

    key = jax.random.PRNGKey(0)
    k_e, k_w, k_b, k_e2 = jax.random.split(key, 4)

    fan_in, fan_out = hidden_dim + 1, hidden_dim
    limit = math.sqrt(6.0 / (fan_in + fan_out))
    weight = jax.random.uniform(
        k_w, (hidden_dim, hidden_dim + 1), minval=-limit, maxval=limit,
        dtype=jnp.float32)
    bias = jax.random.uniform(
        k_b, (hidden_dim,), minval=-0.1, maxval=0.1, dtype=jnp.float32)

    # Primary check: N a multiple of the lane-pack factor (P = 4 for H = 32).
    e = jax.random.uniform(k_e, (256,), minval=-2.0, maxval=2.0, dtype=jnp.float32)
    out = jax.block_until_ready(sine_encoding(e, weight, bias, hidden_dim=hidden_dim))
    ref = sine_encoding_ref(e, weight, bias, hidden_dim=hidden_dim)
    assert out.shape == (256, hidden_dim)
    err = float(jnp.max(jnp.abs(out - ref)))
    assert jnp.allclose(out, ref, atol=2e-4, rtol=2e-4), err

    # Secondary check: N not a multiple of P (exercises the pad/slice path).
    e2 = jax.random.uniform(k_e2, (250,), minval=-2.0, maxval=2.0, dtype=jnp.float32)
    out2 = jax.block_until_ready(sine_encoding(e2, weight, bias, hidden_dim=hidden_dim))
    ref2 = sine_encoding_ref(e2, weight, bias, hidden_dim=hidden_dim)
    assert out2.shape == (250, hidden_dim)
    err2 = float(jnp.max(jnp.abs(out2 - ref2)))
    assert jnp.allclose(out2, ref2, atol=2e-4, rtol=2e-4), err2

    print("KERNEL_OK")
</pallas_src>

<mosaic_0001>
module attributes {stable_mosaic.version = 11 : i64} {
  func.func @_sine_encoding_kernel(%arg0: i32, %arg1: memref<64x8xf32, #tpu.memory_space<vmem>>, %arg2: memref<8x128xf32, #tpu.memory_space<vmem>>, %arg3: memref<8x128xf32, #tpu.memory_space<vmem>>, %arg4: memref<128x128xf32, #tpu.memory_space<vmem>>, %arg5: memref<64x128xf32, #tpu.memory_space<vmem>>) attributes {dimension_semantics = [#tpu.dimension_semantics<parallel>], iteration_bounds = array<i64: 1>, scalar_prefetch = 0 : i64, scratch_operands = 0 : i64, tpu.core_type = #tpu.core_type<tc>, window_params = [{transform_indices = @transform_0, window_bounds = array<i64: 64, 8>}, {pipeline_mode = #tpu.pipeline_mode<synchronous>, transform_indices = @transform_1, window_bounds = array<i64: 8, 128>}, {pipeline_mode = #tpu.pipeline_mode<synchronous>, transform_indices = @transform_2, window_bounds = array<i64: 8, 128>}, {pipeline_mode = #tpu.pipeline_mode<synchronous>, transform_indices = @transform_3, window_bounds = array<i64: 128, 128>}, {transform_indices = @transform_4, window_bounds = array<i64: 64, 128>}]} {
    %c0 = arith.constant 0 : index
    %c0_0 = arith.constant 0 : index
    %0 = vector.load %arg1[%c0, %c0_0] : memref<64x8xf32, #tpu.memory_space<vmem>>, vector<64x8xf32>
    %c0_1 = arith.constant 0 : index
    %c0_2 = arith.constant 0 : index
    %1 = vector.load %arg2[%c0_1, %c0_2] : memref<8x128xf32, #tpu.memory_space<vmem>>, vector<8x128xf32>
    %cst = arith.constant dense<0.000000e+00> : vector<64x128xf32>
    %2 = tpu.matmul %0, %1, %cst {dimension_numbers = #tpu.dot_dimension_numbers<[1], [0], [0], [1], [0, 0, 1, 1], [], []>} : vector<64x8xf32>, vector<8x128xf32>, vector<64x128xf32> -> vector<64x128xf32>
    %3 = math.sin %2 : vector<64x128xf32>
    %c0_3 = arith.constant 0 : index
    %c0_4 = arith.constant 0 : index
    %4 = vector.load %arg4[%c0_3, %c0_4] : memref<128x128xf32, #tpu.memory_space<vmem>>, vector<128x128xf32>
    %cst_5 = arith.constant dense<0.000000e+00> : vector<64x128xf32>
    %5 = tpu.matmul %3, %4, %cst_5 {dimension_numbers = #tpu.dot_dimension_numbers<[1], [0], [0], [1], [0, 0, 1, 1], [], []>} : vector<64x128xf32>, vector<128x128xf32>, vector<64x128xf32> -> vector<64x128xf32>
    %c0_6 = arith.constant 0 : index
    %c0_7 = arith.constant 0 : index
    %6 = vector.load %arg3[%c0_6, %c0_7] : memref<8x128xf32, #tpu.memory_space<vmem>>, vector<8x128xf32>
    %cst_8 = arith.constant dense<0.000000e+00> : vector<64x128xf32>
    %7 = tpu.matmul %0, %6, %cst_8 {dimension_numbers = #tpu.dot_dimension_numbers<[1], [0], [0], [1], [0, 0, 1, 1], [], []>} : vector<64x8xf32>, vector<8x128xf32>, vector<64x128xf32> -> vector<64x128xf32>
    %8 = arith.addf %5, %7 : vector<64x128xf32>
    %c0_9 = arith.constant 0 : index
    %c0_10 = arith.constant 0 : index
    %9 = vector.load %arg5[%c0_9, %c0_10] : memref<64x128xf32, #tpu.memory_space<vmem>>, vector<64x128xf32>
    tpu.vector_store %arg5[%c0_9, %c0_10], %8 {strides = array<i32>} : memref<64x128xf32, #tpu.memory_space<vmem>>, vector<64x128xf32>,
    return
  }
  func.func @transform_0(%arg0: i32) -> (i32, i32) {
    %c0_i32 = arith.constant 0 : i32
    %c0_i32_0 = arith.constant 0 : i32
    return %arg0, %c0_i32 : i32, i32
  }
  func.func @transform_1(%arg0: i32) -> (i32, i32) {
    %c0_i32 = arith.constant 0 : i32
    %c0_i32_0 = arith.constant 0 : i32
    %c0_i32_1 = arith.constant 0 : i32
    return %c0_i32, %c0_i32_0 : i32, i32
  }
  func.func @transform_2(%arg0: i32) -> (i32, i32) {
    %c0_i32 = arith.constant 0 : i32
    %c0_i32_0 = arith.constant 0 : i32
    %c0_i32_1 = arith.constant 0 : i32
    return %c0_i32, %c0_i32_0 : i32, i32
  }
  func.func @transform_3(%arg0: i32) -> (i32, i32) {
    %c0_i32 = arith.constant 0 : i32
    %c0_i32_0 = arith.constant 0 : i32
    %c0_i32_1 = arith.constant 0 : i32
    return %c0_i32, %c0_i32_0 : i32, i32
  }
  func.func @transform_4(%arg0: i32) -> (i32, i32) {
    %c0_i32 = arith.constant 0 : i32
    %c0_i32_0 = arith.constant 0 : i32
    return %arg0, %c0_i32 : i32, i32
  }
}

</mosaic_0001>

<llo_original>
// kernel: tile.12
$region0: #{tile.12}
  %s0 = inlined_call_operand.vmem [shape: f32[4,32], index: 0, kind: input, shape index: {}]
  %s1 = inlined_call_operand.vmem [shape: f32[1,128], index: 1, kind: output, shape index: {}]
  $region1: #{tile.12} parent=0
    #allocation0 [shape = 'u8[4096]{0}', space=vmem, size = 0x1000, scoped, tag = 'scoped mem for output reshape']
    #allocation1 [shape = 'u8[4096]{0}', space=vmem, size = 0x1000, scoped, tag = 'scoped mem for input reshape']
    %s3 = sshllo.u32 0, 4
    %v4 = vld [vmem:[%s0] sm:%s3]
    %5 = vst [vmem:[#allocation1] sm:%s3] %v4
    %v6 = vld [vmem:[#allocation1] sm:$0x1]
    %vm7 = vcmask 261120
    %8 = vst.msk [vmem:[#allocation0] sm:$0x1] %vm7, %v6
    %s9 = scalar_lea.vmem [#allocation1], 3
    %v10 = vld [vmem:[%s9] sm:$0x1]
    %11 = vrot.lane.b32.xlu0 %v10, 96
    %v12 = vpop.permute.xlu0 %11
    %vm13 = vcmask 1048320
    %14 = vst.msk [vmem:[#allocation0] sm:$0x1] %vm13, %v12
    %s15 = scalar_lea.vmem [#allocation1], 2
    %v16 = vld [vmem:[%s15] sm:$0x1]
    %17 = vrot.lane.b32.xlu0 %v16, 64
    %v18 = vpop.permute.xlu0 %17
    %vm19 = vcmask 785920
    %20 = vst.msk [vmem:[#allocation0] sm:$0x1] %vm19, %v18
    %s21 = scalar_lea.vmem [#allocation1], 1
    %v22 = vld [vmem:[%s21] sm:$0x1]
    %23 = vrot.lane.b32.xlu0 %v22, 32
    %v24 = vpop.permute.xlu0 %23
    %vm25 = vcmask 523520
    %26 = vst.msk [vmem:[#allocation0] sm:$0x1] %vm25, %v24
    %s28 = sshllo.u32 0, 1
    %v30 = vld [vmem:[#allocation0] sm:%s28]
    %s31 = sshllo.u32 0, 1
    %32 = vst [vmem:[%s1] sm:%s31] %v30

// kernel: sine_encoding.1
$region0: #{sine_encoding.1}
  #allocation0 [shape = 'u32[]', space=smem, size = 0x4, offset = 0x4, fixed_abs, tag = 'smem constant byte address 0x4 - core index']
  #allocation1 [shape = 'u32[144,128]{1,0:T(1,128)}', space=vmem, size = 0x12000, scoped, tag = 'internal scratch']
  %s0 = inlined_call_operand.vmem [shape: f32[64,8], index: 0, kind: input, shape index: {}]
  %s1 = inlined_call_operand.vmem [shape: f32[8,128], index: 1, kind: input, shape index: {}]
  %s2 = inlined_call_operand.vmem [shape: f32[8,128], index: 2, kind: input, shape index: {}]
  %s3 = inlined_call_operand.vmem [shape: f32[128,128], index: 3, kind: input, shape index: {}]
  %s4 = inlined_call_operand.vmem [shape: f32[64,128], index: 4, kind: output, shape index: {}]
  %s5 = sld [smem:[#allocation0]]
  $region26: #{sine_encoding.1} parent=0
    _
  %s7 = ssub.s32 1, %s5
  %s8 = scalar_select 0, %s7, %s5
  // Predicated region
  $region2: #{sine_encoding.1} parent=0 // pred_check
    _
  $region3: #{sine_encoding.1} parent=0 // pred_check_branch
    %10 = sbr.rel (0) target = $region5
  $region4: #{sine_encoding.1} parent=0 // pred_region
    _
  $region5: #{sine_encoding.1} parent=0 // pred_fallthru
    _
  // Predicated region
  $region6: #{sine_encoding.1} parent=0 // pred_check
    _
  $region7: #{sine_encoding.1} parent=0 // pred_check_branch
    %12 = sbr.rel (0) target = $region9
  $region8: #{sine_encoding.1} parent=0 // pred_region
    _
  $region9: #{sine_encoding.1} parent=0 // pred_fallthru
    _
  // Predicated region
  $region10: #{sine_encoding.1} parent=0 // pred_check
    _
  $region11: #{sine_encoding.1} parent=0 // pred_check_branch
    %14 = sbr.rel (0) target = $region13
  $region12: #{sine_encoding.1} parent=0 // pred_region
    _
  $region13: #{sine_encoding.1} parent=0 // pred_fallthru
    _
  // Predicated region
  $region14: #{sine_encoding.1} parent=0 // pred_check
    _
  $region15: #{sine_encoding.1} parent=0 // pred_check_branch
    %16 = sbr.rel (0) target = $region17
  $region16: #{sine_encoding.1} parent=0 // pred_region
    _
  $region17: #{sine_encoding.1} parent=0 // pred_fallthru
    _
  %v17 = vld [vmem:[%s0] sm:$0xff]
  %v18 = vld [vmem:[%s0 + $0x8] sm:$0xff]
  %v19 = vld [vmem:[%s0 + $0x10] sm:$0xff]
  %v20 = vld [vmem:[%s0 + $0x18] sm:$0xff]
  %v21 = vld [vmem:[%s0 + $0x20] sm:$0xff]
  %v22 = vld [vmem:[%s0 + $0x28] sm:$0xff]
  %v23 = vld [vmem:[%s0 + $0x30] sm:$0xff]
  %v24 = vld [vmem:[%s0 + $0x38] sm:$0xff]
  %v25 = vld [vmem:[%s1] sm:$0xff]
  %vm26 = vcmask 64512
  %v28 = vsel %vm26, %v17, 0
  %v31 = vsel %vm26, %v18, 0
  %v34 = vsel %vm26, %v19, 0
  %v37 = vsel %vm26, %v20, 0
  %v40 = vsel %vm26, %v21, 0
  %v43 = vsel %vm26, %v22, 0
  %v46 = vsel %vm26, %v23, 0
  %v49 = vsel %vm26, %v24, 0
  %51 = vmatprep.subr.mxu0 0.0
  %52 = vmatpush1.msra.mxu0 %v25
  %53 = vmatprep.subr.mxu0 0.0
  %54 = vmatpush1.msra.mxu0 0.0
  %55 = vmatprep.subr.mxu0 0.0
  %56 = vmatpush1.msra.mxu0 0.0
  %57 = vmatprep.subr.mxu0 0.0
  %58 = vmatpush1.msra.mxu0 0.0
  %59 = vmatprep.subr.mxu0 0.0
  %60 = vmatpush1.msra.mxu0 0.0
  %61 = vmatprep.subr.mxu0 0.0
  %62 = vmatpush1.msra.mxu0 0.0
  %63 = vmatprep.subr.mxu0 0.0
  %64 = vmatpush1.msra.mxu0 0.0
  %65 = vmatprep.subr.mxu0 0.0
  %66 = vmatpush1.msra.mxu0 0.0
  %67 = vmatprep.subr.mxu0 0.0
  %68 = vmatpush1.msra.mxu0 0.0
  %69 = vmatprep.subr.mxu0 0.0
  %70 = vmatpush1.msra.mxu0 0.0
  %71 = vmatprep.subr.mxu0 0.0
  %72 = vmatpush1.msra.mxu0 0.0
  %73 = vmatprep.subr.mxu0 0.0
  %74 = vmatpush1.msra.mxu0 0.0
  %75 = vmatprep.subr.mxu0 0.0
  %76 = vmatpush1.msra.mxu0 0.0
  %77 = vmatprep.subr.mxu0 0.0
  %78 = vmatpush1.msra.mxu0 0.0
  %79 = vmatprep.subr.mxu0 0.0
  %80 = vmatpush1.msra.mxu0 0.0
  %81 = vmatprep.subr.mxu0 0.0
  %82 = vmatpush1.msra.mxu0 0.0
  %83 = vmatprep.subr.mxu0 0.0
  %84 = vmatpush1.msra.mxu0 0.0
  %85 = vmatprep.subr.mxu0 0.0
  %86 = vmatpush1.msra.mxu0 0.0
  %87 = vmatprep.subr.mxu0 0.0
  %88 = vmatpush1.msra.mxu0 0.0
  %89 = vmatprep.subr.mxu0 0.0
  %90 = vmatpush1.msra.mxu0 0.0
  %91 = vmatprep.subr.mxu0 0.0
  %92 = vmatpush1.msra.mxu0 0.0
  %93 = vmatprep.subr.mxu0 0.0
  %94 = vmatpush1.msra.mxu0 0.0
  %95 = vmatprep.subr.mxu0 0.0
  %96 = vmatpush1.msra.mxu0 0.0
  %97 = vmatprep.subr.mxu0 0.0
  %98 = vmatpush1.msra.mxu0 0.0
  %99 = vmatprep.subr.mxu0 0.0
  %100 = vmatpush1.msra.mxu0 0.0
  %101 = vmatprep.subr.mxu0 0.0
  %102 = vmatpush1.msra.mxu0 0.0
  %103 = vmatprep.subr.mxu0 0.0
  %104 = vmatpush1.msra.mxu0 0.0
  %105 = vmatprep.subr.mxu0 0.0
  %106 = vmatpush1.msra.mxu0 0.0
  %107 = vmatprep.subr.mxu0 0.0
  %108 = vmatpush1.msra.mxu0 0.0
  %109 = vmatprep.subr.mxu0 0.0
  %110 = vmatpush1.msra.mxu0 0.0
  %111 = vmatprep.subr.mxu0 0.0
  %112 = vmatpush1.msra.mxu0 0.0
  %113 = vmatprep.subr.mxu0 0.0
  %114 = vmatpush1.msra.mxu0 0.0
  %115 = vmatprep.mubr.f32.mxu0 0.0
  %116 = vmatmul.mubr.f32.gmra.mrb[0].mxu0 %v28
  %v117 = vpop.f32.mrb[0].mxu0
  %v118 = vadd.f32 0.0, %v117
  %v119 = vpop.f32.mrb[0].mxu0
  %120 = vmatprep.mubr.f32.mxu0 0.0
  %121 = vmatmul.mubr.f32.gmra.mrb[0].mxu0 %v31
  %v122 = vpop.f32.mrb[0].mxu0
  %v123 = vadd.f32 0.0, %v122
  %v124 = vpop.f32.mrb[0].mxu0
  %125 = vmatprep.mubr.f32.mxu0 0.0
  %126 = vmatmul.mubr.f32.gmra.mrb[0].mxu0 %v34
  %v127 = vpop.f32.mrb[0].mxu0
  %v128 = vadd.f32 0.0, %v127
  %v129 = vpop.f32.mrb[0].mxu0
  %130 = vmatprep.mubr.f32.mxu0 0.0
  %131 = vmatmul.mubr.f32.gmra.mrb[0].mxu0 %v37
  %v132 = vpop.f32.mrb[0].mxu0
  %v133 = vadd.f32 0.0, %v132
  %v134 = vpop.f32.mrb[0].mxu0
  %135 = vmatprep.mubr.f32.mxu0 0.0
  %136 = vmatmul.mubr.f32.gmra.mrb[0].mxu0 %v40
  %v137 = vpop.f32.mrb[0].mxu0
  %v138 = vadd.f32 0.0, %v137
  %v139 = vpop.f32.mrb[0].mxu0
  %140 = vmatprep.mubr.f32.mxu0 0.0
  %141 = vmatmul.mubr.f32.gmra.mrb[0].mxu0 %v43
  %v142 = vpop.f32.mrb[0].mxu0
  %v143 = vadd.f32 0.0, %v142
  %v144 = vpop.f32.mrb[0].mxu0
  %145 = vmatprep.mubr.f32.mxu0 0.0
  %146 = vmatmul.mubr.f32.gmra.mrb[0].mxu0 %v46
  %v147 = vpop.f32.mrb[0].mxu0
  %v148 = vadd.f32 0.0, %v147
  %v149 = vpop.f32.mrb[0].mxu0
  %150 = vmatprep.mubr.f32.mxu0 0.0
  %151 = vmatmul.mubr.f32.gmra.mrb[0].mxu0 %v49
  %v152 = vpop.f32.mrb[0].mxu0
  %v153 = vadd.f32 0.0, %v152
  %v154 = vpop.f32.mrb[0].mxu0
  %155 = vdwg.mxu0
  %v156 = vand.u32 2147483647, %v118
  %vm157 = vcmp.le.f32.partialorder %v156, 0.7853982
  %vm158 = vcmp.lt.s32.totalorder %v118, 0
  %v159 = vand.u32 %v118, 2139095040
  %v160 = vshrl.u32 %v159, 23
  %v161 = vsub.s32 %v160, 127
  %v162 = vand.u32 2147483647, %v118
  %v163 = vand.u32 %v162, 8388607
  %v164 = vor.u32 %v163, 8388608
  %v165 = vsub.s32 0, %v164
  %v166 = vadd.s32 %v161, 1
  %vm167 = vcmp.gt.s32.totalorder %v166, 0
  %v168 = vsel %vm167, %v166, 0
  %v169 = vshrl.u32 %v168, 5
  %v170 = vand.u32 %v168, 31
  %v171 = vsub.s32 32, %v170
  %v172 = vshrl.u32 683565275, %v171
  %v173 = vshll.u32 683565275, %v170
  %v174 = vshrl.u32 2475754826, %v171
  %v175 = vor.u32 %v173, %v174
  %v176 = vshll.u32 2475754826, %v170
  %v177 = vshrl.u32 2131351028, %v171
  %v178 = vor.u32 %v176, %v177
  %v179 = vshll.u32 2131351028, %v170
  %v180 = vshrl.u32 2102212464, %v171
  %v181 = vor.u32 %v179, %v180
  %v182 = vshll.u32 2102212464, %v170
  %v183 = vshrl.u32 920167782, %v171
  %v184 = vor.u32 %v182, %v183
  %v185 = vshll.u32 920167782, %v170
  %v186 = vshrl.u32 1326507024, %v171
  %v187 = vor.u32 %v185, %v186
  %vm188 = vcmp.lt.s32.totalorder %v169, 1
  %vm189 = vcmp.lt.s32.totalorder %v169, 2
  %vm190 = vcmp.lt.s32.totalorder %v169, 3
  %vm191 = vcmp.lt.s32.totalorder %v169, 4
  %v192 = vsel %vm188, %v172, %v175
  %v193 = vsel %vm191, %v181, 2102212464
  %v194 = vsel %vm190, %v178, %v193
  %v195 = vsel %vm189, %v192, %v194
  %v196 = vsel %vm188, %v175, %v178
  %v197 = vsel %vm191, %v184, 920167782
  %v198 = vsel %vm190, %v181, %v197
  %v199 = vsel %vm189, %v196, %v198
  %v200 = vsel %vm188, %v178, %v181
  %v201 = vsel %vm191, %v187, 1326507024
  %v202 = vsel %vm190, %v184, %v201
  %v203 = vsel %vm189, %v200, %v202
  %v204 = vshll.u32 %v164, 8
  %v205 = vmul.u32.u64.compose %v204, %v203
  %v206 = vextract.low.u32 %v205
  %v207 = vextract.high.u32 %v205
  %v208 = vmul.u32.u64.compose %v204, %v199
  %v209 = vextract.low.u32 %v208
  %v210 = vextract.high.u32 %v208
  %v211 = vmul.u32 %v204, %v195
  %v212 = vadd.s32 %v207, %v209
  %vm213 = vc.u32 %v207, %v209
  %v214 = vadd.s32 %v210, 1
  %v215 = vsel %vm213, %v214, %v210
  %v216 = vadd.s32 %v211, %v215
  %v217 = vadd.s32 %v216, 536870912
  %v218 = vshrl.u32 %v217, 30
  %v219 = vshll.u32 %v218, 30
  %v220 = vsub.s32 %v216, %v219
  %vm221 = vcmp.lt.s32.totalorder %v220, 0
  %v222 = vsub.s32 0, %v220
  %v223 = vsel %vm221, %v222, %v220
  %v224 = vclz %v223
  %v225 = vsub.s32 %v224, 2
  %vm226 = vcmp.gt.s32.totalorder 0, %v225
  %v227 = vsel %vm226, 0, %v225
  %v228 = vsub.s32 32, %v227
  %v229 = vshll.u32 %v220, %v227
  %v230 = vshrl.u32 %v212, %v228
  %v231 = vor.u32 %v229, %v230
  %v232 = vsub.s32 4294967266, %v227
  %v233 = vadd.s32 %v232, 127
  %v234 = vshll.u32 %v233, 23
  %v235 = vor.u32 4788187, %v234
  %v236 = vand.u32 2147483647, %v235
  %v238 = vcvt.s32.f32 %v231
  %v239 = vmul.f32 %v238, %v236
  %v240 = vxor.u32 %v239, 2147483648
  %v241 = vsel %vm158, %v240, %v239
  %v242 = vsub.s32 4, %v218
  %v243 = vsel %vm158, %v242, %v218
  %v244 = vsel %vm157, %v118, %v241
  %v245 = vsel %vm157, 0, %v243
  %v246 = vcosq.f32.pop %v244
  %v247 = vsinq.f32.pop %v244
  %vm248 = vweird.f32 %v118
  %v249 = vadd.s32 %v245, 3
  %v250 = vand.u32 %v249, 3
  %vm251 = vcmp.lt.s32.totalorder %v250, 2
  %vm252 = vcmp.eq.s32.totalorder %v250, 0
  %v253 = vxor.u32 %v247, 2147483648
  %v254 = vsel %vm252, %v246, %v253
  %vm255 = vcmp.eq.s32.totalorder %v250, 2
  %v256 = vxor.u32 %v246, 2147483648
  %v257 = vsel %vm255, %v256, %v247
  %v258 = vsel %vm251, %v254, %v257
  %v259 = vsel %vm248, nan, %v258
  %v260 = vand.u32 2147483647, %v123
  %vm261 = vcmp.le.f32.partialorder %v260, 0.7853982
  %vm262 = vcmp.lt.s32.totalorder %v123, 0
  %v263 = vand.u32 %v123, 2139095040
  %v264 = vshrl.u32 %v263, 23
  %v265 = vsub.s32 %v264, 127
  %v266 = vand.u32 2147483647, %v123
  %v267 = vand.u32 %v266, 8388607
  %v268 = vor.u32 %v267, 8388608
  %v269 = vsub.s32 0, %v268
  %v270 = vadd.s32 %v265, 1
  %vm271 = vcmp.gt.s32.totalorder %v270, 0
  %v272 = vsel %vm271, %v270, 0
  %v273 = vshrl.u32 %v272, 5
  %v274 = vand.u32 %v272, 31
  %v275 = vsub.s32 32, %v274
  %v276 = vshrl.u32 683565275, %v275
  %v277 = vshll.u32 683565275, %v274
  %v278 = vshrl.u32 2475754826, %v275
  %v279 = vor.u32 %v277, %v278
  %v280 = vshll.u32 2475754826, %v274
  %v281 = vshrl.u32 2131351028, %v275
  %v282 = vor.u32 %v280, %v281
  %v283 = vshll.u32 2131351028, %v274
  %v284 = vshrl.u32 2102212464, %v275
  %v285 = vor.u32 %v283, %v284
  %v286 = vshll.u32 2102212464, %v274
  %v287 = vshrl.u32 920167782, %v275
  %v288 = vor.u32 %v286, %v287
  %v289 = vshll.u32 920167782, %v274
  %v290 = vshrl.u32 1326507024, %v275
  %v291 = vor.u32 %v289, %v290
  %vm292 = vcmp.lt.s32.totalorder %v273, 1
  %vm293 = vcmp.lt.s32.totalorder %v273, 2
  %vm294 = vcmp.lt.s32.totalorder %v273, 3
  %vm295 = vcmp.lt.s32.totalorder %v273, 4
  %v296 = vsel %vm292, %v276, %v279
  %v297 = vsel %vm295, %v285, 2102212464
  %v298 = vsel %vm294, %v282, %v297
  %v299 = vsel %vm293, %v296, %v298
  %v300 = vsel %vm292, %v279, %v282
  %v301 = vsel %vm295, %v288, 920167782
  %v302 = vsel %vm294, %v285, %v301
  %v303 = vsel %vm293, %v300, %v302
  %v304 = vsel %vm292, %v282, %v285
  %v305 = vsel %vm295, %v291, 1326507024
  %v306 = vsel %vm294, %v288, %v305
  %v307 = vsel %vm293, %v304, %v306
  %v308 = vshll.u32 %v268, 8
  %v309 = vmul.u32.u64.compose %v308, %v307
  %v310 = vextract.low.u32 %v309
  %v311 = vextract.high.u32 %v309
  %v312 = vmul.u32.u64.compose %v308, %v303
  %v313 = vextract.low.u32 %v312
  %v314 = vextract.high.u32 %v312
  %v315 = vmul.u32 %v308, %v299
  %v316 = vadd.s32 %v311, %v313
  %vm317 = vc.u32 %v311, %v313
  %v318 = vadd.s32 %v314, 1
  %v319 = vsel %vm317, %v318, %v314
  %v320 = vadd.s32 %v315, %v319
  %v321 = vadd.s32 %v320, 536870912
  %v322 = vshrl.u32 %v321, 30
  %v323 = vshll.u32 %v322, 30
  %v324 = vsub.s32 %v320, %v323
  %vm325 = vcmp.lt.s32.totalorder %v324, 0
  %v326 = vsub.s32 0, %v324
  %v327 = vsel %vm325, %v326, %v324
  %v328 = vclz %v327
  %v329 = vsub.s32 %v328, 2
  %vm330 = vcmp.gt.s32.totalorder 0, %v329
  %v331 = vsel %vm330, 0, %v329
  %v332 = vsub.s32 32, %v331
  %v333 = vshll.u32 %v324, %v331
  %v334 = vshrl.u32 %v316, %v332
  %v335 = vor.u32 %v333, %v334
  %v336 = vsub.s32 4294967266, %v331
  %v337 = vadd.s32 %v336, 127
  %v338 = vshll.u32 %v337, 23
  %v339 = vor.u32 4788187, %v338
  %v340 = vand.u32 2147483647, %v339
  %v342 = vcvt.s32.f32 %v335
  %v343 = vmul.f32 %v342, %v340
  %v344 = vxor.u32 %v343, 2147483648
  %v345 = vsel %vm262, %v344, %v343
  %v346 = vsub.s32 4, %v322
  %v347 = vsel %vm262, %v346, %v322
  %v348 = vsel %vm261, %v123, %v345
  %v349 = vsel %vm261, 0, %v347
  %v350 = vcosq.f32.pop %v348
  %v351 = vsinq.f32.pop %v348
  %vm352 = vweird.f32 %v123
  %v353 = vadd.s32 %v349, 3
  %v354 = vand.u32 %v353, 3
  %vm355 = vcmp.lt.s32.totalorder %v354, 2
  %vm356 = vcmp.eq.s32.totalorder %v354, 0
  %v357 = vxor.u32 %v351, 2147483648
  %v358 = vsel %vm356, %v350, %v357
  %vm359 = vcmp.eq.s32.totalorder %v354, 2
  %v360 = vxor.u32 %v350, 2147483648
  %v361 = vsel %vm359, %v360, %v351
  %v362 = vsel %vm355, %v358, %v361
  %v363 = vsel %vm352, nan, %v362
  %v364 = vand.u32 2147483647, %v128
  %vm365 = vcmp.le.f32.partialorder %v364, 0.7853982
  %vm366 = vcmp.lt.s32.totalorder %v128, 0
  %v367 = vand.u32 %v128, 2139095040
  %v368 = vshrl.u32 %v367, 23
  %v369 = vsub.s32 %v368, 127
  %v370 = vand.u32 2147483647, %v128
  %v371 = vand.u32 %v370, 8388607
  %v372 = vor.u32 %v371, 8388608
  %v373 = vsub.s32 0, %v372
  %v374 = vadd.s32 %v369, 1
  %vm375 = vcmp.gt.s32.totalorder %v374, 0
  %v376 = vsel %vm375, %v374, 0
  %v377 = vshrl.u32 %v376, 5
  %v378 = vand.u32 %v376, 31
  %v379 = vsub.s32 32, %v378
  %v380 = vshrl.u32 683565275, %v379
  %v381 = vshll.u32 683565275, %v378
  %v382 = vshrl.u32 2475754826, %v379
  %v383 = vor.u32 %v381, %v382
  %v384 = vshll.u32 2475754826, %v378
  %v385 = vshrl.u32 2131351028, %v379
  %v386 = vor.u32 %v384, %v385
  %v387 = vshll.u32 2131351028, %v378
  %v388 = vshrl.u32 2102212464, %v379
  %v389 = vor.u32 %v387, %v388
  %v390 = vshll.u32 2102212464, %v378
  %v391 = vshrl.u32 920167782, %v379
  %v392 = vor.u32 %v390, %v391
  %v393 = vshll.u32 920167782, %v378
  %v394 = vshrl.u32 1326507024, %v379
  %v395 = vor.u32 %v393, %v394
  %vm396 = vcmp.lt.s32.totalorder %v377, 1
  %vm397 = vcmp.lt.s32.totalorder %v377, 2
  %vm398 = vcmp.lt.s32.totalorder %v377, 3
  %vm399 = vcmp.lt.s32.totalorder %v377, 4
  %v400 = vsel %vm396, %v380, %v383
  %v401 = vsel %vm399, %v389, 2102212464
  %v402 = vsel %vm398, %v386, %v401
  %v403 = vsel %vm397, %v400, %v402
  %v404 = vsel %vm396, %v383, %v386
  %v405 = vsel %vm399, %v392, 920167782
  %v406 = vsel %vm398, %v389, %v405
  %v407 = vsel %vm397, %v404, %v406
  %v408 = vsel %vm396, %v386, %v389
  %v409 = vsel %vm399, %v395, 1326507024
  %v410 = vsel %vm398, %v392, %v409
  %v411 = vsel %vm397, %v408, %v410
  %v412 = vshll.u32 %v372, 8
  %v413 = vmul.u32.u64.compose %v412, %v411
  %v414 = vextract.low.u32 %v413
  %v415 = vextract.high.u32 %v413
  %v416 = vmul.u32.u64.compose %v412, %v407
  %v417 = vextract.low.u32 %v416
  %v418 = vextract.high.u32 %v416
  %v419 = vmul.u32 %v412, %v403
  %v420 = vadd.s32 %v415, %v417
  %vm421 = vc.u32 %v415, %v417
  %v422 = vadd.s32 %v418, 1
  %v423 = vsel %vm421, %v422, %v418
  %v424 = vadd.s32 %v419, %v423
  %v425 = vadd.s32 %v424, 536870912
  %v426 = vshrl.u32 %v425, 30
  %v427 = vshll.u32 %v426, 30
  %v428 = vsub.s32 %v424, %v427
  %vm429 = vcmp.lt.s32.totalorder %v428, 0
  %v430 = vsub.s32 0, %v428
  %v431 = vsel %vm429, %v430, %v428
  %v432 = vclz %v431
  %v433 = vsub.s32 %v432, 2
  %vm434 = vcmp.gt.s32.totalorder 0, %v433
  %v435 = vsel %vm434, 0, %v433
  %v436 = vsub.s32 32, %v435
  %v437 = vshll.u32 %v428, %v435
  %v438 = vshrl.u32 %v420, %v436
  %v439 = vor.u32 %v437, %v438
  %v440 = vsub.s32 4294967266, %v435
  %v441 = vadd.s32 %v440, 127
  %v442 = vshll.u32 %v441, 23
  %v443 = vor.u32 4788187, %v442
  %v444 = vand.u32 2147483647, %v443
  %v446 = vcvt.s32.f32 %v439
  %v447 = vmul.f32 %v446, %v444
  %v448 = vxor.u32 %v447, 2147483648
  %v449 = vsel %vm366, %v448, %v447
  %v450 = vsub.s32 4, %v426
  %v451 = vsel %vm366, %v450, %v426
  %v452 = vsel %vm365, %v128, %v449
  %v453 = vsel %vm365, 0, %v451
  %v454 = vcosq.f32.pop %v452
  %v455 = vsinq.f32.pop %v452
  %vm456 = vweird.f32 %v128
  %v457 = vadd.s32 %v453, 3
  %v458 = vand.u32 %v457, 3
  %vm459 = vcmp.lt.s32.totalorder %v458, 2
  %vm460 = vcmp.eq.s32.totalorder %v458, 0
  %v461 = vxor.u32 %v455, 2147483648
  %v462 = vsel %vm460, %v454, %v461
  %vm463 = vcmp.eq.s32.totalorder %v458, 2
  %v464 = vxor.u32 %v454, 2147483648
  %v465 = vsel %vm463, %v464, %v455
  %v466 = vsel %vm459, %v462, %v465
  %v467 = vsel %vm456, nan, %v466
  %v468 = vand.u32 2147483647, %v133
  %vm469 = vcmp.le.f32.partialorder %v468, 0.7853982
  %vm470 = vcmp.lt.s32.totalorder %v133, 0
  %v471 = vand.u32 %v133, 2139095040
  %v472 = vshrl.u32 %v471, 23
  %v473 = vsub.s32 %v472, 127
  %v474 = vand.u32 2147483647, %v133
  %v475 = vand.u32 %v474, 8388607
  %v476 = vor.u32 %v475, 8388608
  %v477 = vsub.s32 0, %v476
  %v478 = vadd.s32 %v473, 1
  %vm479 = vcmp.gt.s32.totalorder %v478, 0
  %v480 = vsel %vm479, %v478, 0
  %v481 = vshrl.u32 %v480, 5
  %v482 = vand.u32 %v480, 31
  %v483 = vsub.s32 32, %v482
  %v484 = vshrl.u32 683565275, %v483
  %v485 = vshll.u32 683565275, %v482
  %v486 = vshrl.u32 2475754826, %v483
  %v487 = vor.u32 %v485, %v486
  %v488 = vshll.u32 2475754826, %v482
  %v489 = vshrl.u32 2131351028, %v483
  %v490 = vor.u32 %v488, %v489
  %v491 = vshll.u32 2131351028, %v482
  %v492 = vshrl.u32 2102212464, %v483
  %v493 = vor.u32 %v491, %v492
  %v494 = vshll.u32 2102212464, %v482
  %v495 = vshrl.u32 920167782, %v483
  %v496 = vor.u32 %v494, %v495
  %v497 = vshll.u32 920167782, %v482
  %v498 = vshrl.u32 1326507024, %v483
  %v499 = vor.u32 %v497, %v498
  %vm500 = vcmp.lt.s32.totalorder %v481, 1
  %vm501 = vcmp.lt.s32.totalorder %v481, 2
  %vm502 = vcmp.lt.s32.totalorder %v481, 3
  %vm503 = vcmp.lt.s32.totalorder %v481, 4
  %v504 = vsel %vm500, %v484, %v487
  %v505 = vsel %vm503, %v493, 2102212464
  %v506 = vsel %vm502, %v490, %v505
  %v507 = vsel %vm501, %v504, %v506
  %v508 = vsel %vm500, %v487, %v490
  %v509 = vsel %vm503, %v496, 920167782
  %v510 = vsel %vm502, %v493, %v509
  %v511 = vsel %vm501, %v508, %v510
  %v512 = vsel %vm500, %v490, %v493
  %v513 = vsel %vm503, %v499, 1326507024
  %v514 = vsel %vm502, %v496, %v513
  %v515 = vsel %vm501, %v512, %v514
  %v516 = vshll.u32 %v476, 8
  %v517 = vmul.u32.u64.compose %v516, %v515
  %v518 = vextract.low.u32 %v517
  %v519 = vextract.high.u32 %v517
  %v520 = vmul.u32.u64.compose %v516, %v511
  %v521 = vextract.low.u32 %v520
  %v522 = vextract.high.u32 %v520
  %v523 = vmul.u32 %v516, %v507
  %v524 = vadd.s32 %v519, %v521
  %vm525 = vc.u32 %v519, %v521
  %v526 = vadd.s32 %v522, 1
  %v527 = vsel %vm525, %v526, %v522
  %v528 = vadd.s32 %v523, %v527
  %v529 = vadd.s32 %v528, 536870912
  %v530 = vshrl.u32 %v529, 30
  %v531 = vshll.u32 %v530, 30
  %v532 = vsub.s32 %v528, %v531
  %vm533 = vcmp.lt.s32.totalorder %v532, 0
  %v534 = vsub.s32 0, %v532
  %v535 = vsel %vm533, %v534, %v532
  %v536 = vclz %v535
  %v537 = vsub.s32 %v536, 2
  %vm538 = vcmp.gt.s32.totalorder 0, %v537
  %v539 = vsel %vm538, 0, %v537
  %v540 = vsub.s32 32, %v539
  %v541 = vshll.u32 %v532, %v539
  %v542 = vshrl.u32 %v524, %v540
  %v543 = vor.u32 %v541, %v542
  %v544 = vsub.s32 4294967266, %v539
  %v545 = vadd.s32 %v544, 127
  %v546 = vshll.u32 %v545, 23
  %v547 = vor.u32 4788187, %v546
  %v548 = vand.u32 2147483647, %v547
  %v550 = vcvt.s32.f32 %v543
  %v551 = vmul.f32 %v550, %v548
  %v552 = vxor.u32 %v551, 2147483648
  %v553 = vsel %vm470, %v552, %v551
  %v554 = vsub.s32 4, %v530
  %v555 = vsel %vm470, %v554, %v530
  %v556 = vsel %vm469, %v133, %v553
  %v557 = vsel %vm469, 0, %v555
  %v558 = vcosq.f32.pop %v556
  %v559 = vsinq.f32.pop %v556
  %vm560 = vweird.f32 %v133
  %v561 = vadd.s32 %v557, 3
  %v562 = vand.u32 %v561, 3
  %vm563 = vcmp.lt.s32.totalorder %v562, 2
  %vm564 = vcmp.eq.s32.totalorder %v562, 0
  %v565 = vxor.u32 %v559, 2147483648
  %v566 = vsel %vm564, %v558, %v565
  %vm567 = vcmp.eq.s32.totalorder %v562, 2
  %v568 = vxor.u32 %v558, 2147483648
  %v569 = vsel %vm567, %v568, %v559
  %v570 = vsel %vm563, %v566, %v569
  %v571 = vsel %vm560, nan, %v570
  %v572 = vand.u32 2147483647, %v138
  %vm573 = vcmp.le.f32.partialorder %v572, 0.7853982
  %vm574 = vcmp.lt.s32.totalorder %v138, 0
  %v575 = vand.u32 %v138, 2139095040
  %v576 = vshrl.u32 %v575, 23
  %v577 = vsub.s32 %v576, 127
  %v578 = vand.u32 2147483647, %v138
  %v579 = vand.u32 %v578, 8388607
  %v580 = vor.u32 %v579, 8388608
  %v581 = vsub.s32 0, %v580
  %v582 = vadd.s32 %v577, 1
  %vm583 = vcmp.gt.s32.totalorder %v582, 0
  %v584 = vsel %vm583, %v582, 0
  %v585 = vshrl.u32 %v584, 5
  %v586 = vand.u32 %v584, 31
  %v587 = vsub.s32 32, %v586
  %v588 = vshrl.u32 683565275, %v587
  %v589 = vshll.u32 683565275, %v586
  %v590 = vshrl.u32 2475754826, %v587
  %v591 = vor.u32 %v589, %v590
  %v592 = vshll.u32 2475754826, %v586
  %v593 = vshrl.u32 2131351028, %v587
  %v594 = vor.u32 %v592, %v593
  %v595 = vshll.u32 2131351028, %v586
  %v596 = vshrl.u32 2102212464, %v587
  %v597 = vor.u32 %v595, %v596
  %v598 = vshll.u32 2102212464, %v586
  %v599 = vshrl.u32 920167782, %v587
  %v600 = vor.u32 %v598, %v599
  %v601 = vshll.u32 920167782, %v586
  %v602 = vshrl.u32 1326507024, %v587
  %v603 = vor.u32 %v601, %v602
  %vm604 = vcmp.lt.s32.totalorder %v585, 1
  %vm605 = vcmp.lt.s32.totalorder %v585, 2
  %vm606 = vcmp.lt.s32.totalorder %v585, 3
  %vm607 = vcmp.lt.s32.totalorder %v585, 4
  %v608 = vsel %vm604, %v588, %v591
  %v609 = vsel %vm607, %v597, 2102212464
  %v610 = vsel %vm606, %v594, %v609
  %v611 = vsel %vm605, %v608, %v610
  %v612 = vsel %vm604, %v591, %v594
  %v613 = vsel %vm607, %v600, 920167782
  %v614 = vsel %vm606, %v597, %v613
  %v615 = vsel %vm605, %v612, %v614
  %v616 = vsel %vm604, %v594, %v597
  %v617 = vsel %vm607, %v603, 1326507024
  %v618 = vsel %vm606, %v600, %v617
  %v619 = vsel %vm605, %v616, %v618
  %v620 = vshll.u32 %v580, 8
  %v621 = vmul.u32.u64.compose %v620, %v619
  %v622 = vextract.low.u32 %v621
  %v623 = vextract.high.u32 %v621
  %v624 = vmul.u32.u64.compose %v620, %v615
  %v625 = vextract.low.u32 %v624
  %v626 = vextract.high.u32 %v624
  %v627 = vmul.u32 %v620, %v611
  %v628 = vadd.s32 %v623, %v625
  %vm629 = vc.u32 %v623, %v625
  %v630 = vadd.s32 %v626, 1
  %v631 = vsel %vm629, %v630, %v626
  %v632 = vadd.s32 %v627, %v631
  %v633 = vadd.s32 %v632, 536870912
  %v634 = vshrl.u32 %v633, 30
  %v635 = vshll.u32 %v634, 30
  %v636 = vsub.s32 %v632, %v635
  %vm637 = vcmp.lt.s32.totalorder %v636, 0
  %v638 = vsub.s32 0, %v636
  %v639 = vsel %vm637, %v638, %v636
  %v640 = vclz %v639
  %v641 = vsub.s32 %v640, 2
  %vm642 = vcmp.gt.s32.totalorder 0, %v641
  %v643 = vsel %vm642, 0, %v641
  %v644 = vsub.s32 32, %v643
  %v645 = vshll.u32 %v636, %v643
  %v646 = vshrl.u32 %v628, %v644
  %v647 = vor.u32 %v645, %v646
  %v648 = vsub.s32 4294967266, %v643
  %v649 = vadd.s32 %v648, 127
  %v650 = vshll.u32 %v649, 23
  %v651 = vor.u32 4788187, %v650
  %v652 = vand.u32 2147483647, %v651
  %v654 = vcvt.s32.f32 %v647
  %v655 = vmul.f32 %v654, %v652
  %v656 = vxor.u32 %v655, 2147483648
  %v657 = vsel %vm574, %v656, %v655
  %v658 = vsub.s32 4, %v634
  %v659 = vsel %vm574, %v658, %v634
  %v660 = vsel %vm573, %v138, %v657
  %v661 = vsel %vm573, 0, %v659
  %v662 = vcosq.f32.pop %v660
  %v663 = vsinq.f32.pop %v660
  %vm664 = vweird.f32 %v138
  %v665 = vadd.s32 %v661, 3
  %v666 = vand.u32 %v665, 3
  %vm667 = vcmp.lt.s32.totalorder %v666, 2
  %vm668 = vcmp.eq.s32.totalorder %v666, 0
  %v669 = vxor.u32 %v663, 2147483648
  %v670 = vsel %vm668, %v662, %v669
  %vm671 = vcmp.eq.s32.totalorder %v666, 2
  %v672 = vxor.u32 %v662, 2147483648
  %v673 = vsel %vm671, %v672, %v663
  %v674 = vsel %vm667, %v670, %v673
  %v675 = vsel %vm664, nan, %v674
  %v676 = vand.u32 2147483647, %v143
  %vm677 = vcmp.le.f32.partialorder %v676, 0.7853982
  %vm678 = vcmp.lt.s32.totalorder %v143, 0
  %v679 = vand.u32 %v143, 2139095040
  %v680 = vshrl.u32 %v679, 23
  %v681 = vsub.s32 %v680, 127
  %v682 = vand.u32 2147483647, %v143
  %v683 = vand.u32 %v682, 8388607
  %v684 = vor.u32 %v683, 8388608
  %v685 = vsub.s32 0, %v684
  %v686 = vadd.s32 %v681, 1
  %vm687 = vcmp.gt.s32.totalorder %v686, 0
  %v688 = vsel %vm687, %v686, 0
  %v689 = vshrl.u32 %v688, 5
  %v690 = vand.u32 %v688, 31
  %v691 = vsub.s32 32, %v690
  %v692 = vshrl.u32 683565275, %v691
  %v693 = vshll.u32 683565275, %v690
  %v694 = vshrl.u32 2475754826, %v691
  %v695 = vor.u32 %v693, %v694
  %v696 = vshll.u32 2475754826, %v690
  %v697 = vshrl.u32 2131351028, %v691
  %v698 = vor.u32 %v696, %v697
  %v699 = vshll.u32 2131351028, %v690
  %v700 = vshrl.u32 2102212464, %v691
  %v701 = vor.u32 %v699, %v700
  %v702 = vshll.u32 2102212464, %v690
  %v703 = vshrl.u32 920167782, %v691
  %v704 = vor.u32 %v702, %v703
  %v705 = vshll.u32 920167782, %v690
  %v706 = vshrl.u32 1326507024, %v691
  %v707 = vor.u32 %v705, %v706
  %vm708 = vcmp.lt.s32.totalorder %v689, 1
  %vm709 = vcmp.lt.s32.totalorder %v689, 2
  %vm710 = vcmp.lt.s32.totalorder %v689, 3
  %vm711 = vcmp.lt.s32.totalorder %v689, 4
  %v712 = vsel %vm708, %v692, %v695
  %v713 = vsel %vm711, %v701, 2102212464
  %v714 = vsel %vm710, %v698, %v713
  %v715 = vsel %vm709, %v712, %v714
  %v716 = vsel %vm708, %v695, %v698
  %v717 = vsel %vm711, %v704, 920167782
  %v718 = vsel %vm710, %v701, %v717
  %v719 = vsel %vm709, %v716, %v718
  %v720 = vsel %vm708, %v698, %v701
  %v721 = vsel %vm711, %v707, 1326507024
  %v722 = vsel %vm710, %v704, %v721
  %v723 = vsel %vm709, %v720, %v722
  %v724 = vshll.u32 %v684, 8
  %v725 = vmul.u32.u64.compose %v724, %v723
  %v726 = vextract.low.u32 %v725
  %v727 = vextract.high.u32 %v725
  %v728 = vmul.u32.u64.compose %v724, %v719
  %v729 = vextract.low.u32 %v728
  %v730 = vextract.high.u32 %v728
  %v731 = vmul.u32 %v724, %v715
  %v732 = vadd.s32 %v727, %v729
  %vm733 = vc.u32 %v727, %v729
  %v734 = vadd.s32 %v730, 1
  %v735 = vsel %vm733, %v734, %v730
  %v736 = vadd.s32 %v731, %v735
  %v737 = vadd.s32 %v736, 536870912
  %v738 = vshrl.u32 %v737, 30
  %v739 = vshll.u32 %v738, 30
  %v740 = vsub.s32 %v736, %v739
  %vm741 = vcmp.lt.s32.totalorder %v740, 0
  %v742 = vsub.s32 0, %v740
  %v743 = vsel %vm741, %v742, %v740
  %v744 = vclz %v743
  %v745 = vsub.s32 %v744, 2
  %vm746 = vcmp.gt.s32.totalorder 0, %v745
  %v747 = vsel %vm746, 0, %v745
  %v748 = vsub.s32 32, %v747
  %v749 = vshll.u32 %v740, %v747
  %v750 = vshrl.u32 %v732, %v748
  %v751 = vor.u32 %v749, %v750
  %v752 = vsub.s32 4294967266, %v747
  %v753 = vadd.s32 %v752, 127
  %v754 = vshll.u32 %v753, 23
  %v755 = vor.u32 4788187, %v754
  %v756 = vand.u32 2147483647, %v755
  %v758 = vcvt.s32.f32 %v751
  %v759 = vmul.f32 %v758, %v756
  %v760 = vxor.u32 %v759, 2147483648
  %v761 = vsel %vm678, %v760, %v759
  %v762 = vsub.s32 4, %v738
  %v763 = vsel %vm678, %v762, %v738
  %v764 = vsel %vm677, %v143, %v761
  %v765 = vsel %vm677, 0, %v763
  %v766 = vcosq.f32.pop %v764
  %v767 = vsinq.f32.pop %v764
  %vm768 = vweird.f32 %v143
  %v769 = vadd.s32 %v765, 3
  %v770 = vand.u32 %v769, 3
  %vm771 = vcmp.lt.s32.totalorder %v770, 2
  %vm772 = vcmp.eq.s32.totalorder %v770, 0
  %v773 = vxor.u32 %v767, 2147483648
  %v774 = vsel %vm772, %v766, %v773
  %vm775 = vcmp.eq.s32.totalorder %v770, 2
  %v776 = vxor.u32 %v766, 2147483648
  %v777 = vsel %vm775, %v776, %v767
  %v778 = vsel %vm771, %v774, %v777
  %v779 = vsel %vm768, nan, %v778
  %v780 = vand.u32 2147483647, %v148
  %vm781 = vcmp.le.f32.partialorder %v780, 0.7853982
  %vm782 = vcmp.lt.s32.totalorder %v148, 0
  %v783 = vand.u32 %v148, 2139095040
  %v784 = vshrl.u32 %v783, 23
  %v785 = vsub.s32 %v784, 127
  %v786 = vand.u32 2147483647, %v148
  %v787 = vand.u32 %v786, 8388607
  %v788 = vor.u32 %v787, 8388608
  %v789 = vsub.s32 0, %v788
  %v790 = vadd.s32 %v785, 1
  %vm791 = vcmp.gt.s32.totalorder %v790, 0
  %v792 = vsel %vm791, %v790, 0
  %v793 = vshrl.u32 %v792, 5
  %v794 = vand.u32 %v792, 31
  %v795 = vsub.s32 32, %v794
  %v796 = vshrl.u32 683565275, %v795
  %v797 = vshll.u32 683565275, %v794
  %v798 = vshrl.u32 2475754826, %v795
  %v799 = vor.u32 %v797, %v798
  %v800 = vshll.u32 2475754826, %v794
  %v801 = vshrl.u32 2131351028, %v795
  %v802 = vor.u32 %v800, %v801
  %v803 = vshll.u32 2131351028, %v794
  %v804 = vshrl.u32 2102212464, %v795
  %v805 = vor.u32 %v803, %v804
  %v806 = vshll.u32 2102212464, %v794
  %v807 = vshrl.u32 920167782, %v795
  %v808 = vor.u32 %v806, %v807
  %v809 = vshll.u32 920167782, %v794
  %v810 = vshrl.u32 1326507024, %v795
  %v811 = vor.u32 %v809, %v810
  %vm812 = vcmp.lt.s32.totalorder %v793, 1
  %vm813 = vcmp.lt.s32.totalorder %v793, 2
  %vm814 = vcmp.lt.s32.totalorder %v793, 3
  %vm815 = vcmp.lt.s32.totalorder %v793, 4
  %v816 = vsel %vm812, %v796, %v799
  %v817 = vsel %vm815, %v805, 2102212464
  %v818 = vsel %vm814, %v802, %v817
  %v819 = vsel %vm813, %v816, %v818
  %v820 = vsel %vm812, %v799, %v802
  %v821 = vsel %vm815, %v808, 920167782
  %v822 = vsel %vm814, %v805, %v821
  %v823 = vsel %vm813, %v820, %v822
  %v824 = vsel %vm812, %v802, %v805
  %v825 = vsel %vm815, %v811, 1326507024
  %v826 = vsel %vm814, %v808, %v825
  %v827 = vsel %vm813, %v824, %v826
  %v828 = vshll.u32 %v788, 8
  %v829 = vmul.u32.u64.compose %v828, %v827
  %v830 = vextract.low.u32 %v829
  %v831 = vextract.high.u32 %v829
  %v832 = vmul.u32.u64.compose %v828, %v823
  %v833 = vextract.low.u32 %v832
  %v834 = vextract.high.u32 %v832
  %v835 = vmul.u32 %v828, %v819
  %v836 = vadd.s32 %v831, %v833
  %vm837 = vc.u32 %v831, %v833
  %v838 = vadd.s32 %v834, 1
  %v839 = vsel %vm837, %v838, %v834
  %v840 = vadd.s32 %v835, %v839
  %v841 = vadd.s32 %v840, 536870912
  %v842 = vshrl.u32 %v841, 30
  %v843 = vshll.u32 %v842, 30
  %v844 = vsub.s32 %v840, %v843
  %vm845 = vcmp.lt.s32.totalorder %v844, 0
  %v846 = vsub.s32 0, %v844
  %v847 = vsel %vm845, %v846, %v844
  %v848 = vclz %v847
  %v849 = vsub.s32 %v848, 2
  %vm850 = vcmp.gt.s32.totalorder 0, %v849
  %v851 = vsel %vm850, 0, %v849
  %v852 = vsub.s32 32, %v851
  %v853 = vshll.u32 %v844, %v851
  %v854 = vshrl.u32 %v836, %v852
  %v855 = vor.u32 %v853, %v854
  %v856 = vsub.s32 4294967266, %v851
  %v857 = vadd.s32 %v856, 127
  %v858 = vshll.u32 %v857, 23
  %v859 = vor.u32 4788187, %v858
  %v860 = vand.u32 2147483647, %v859
  %v862 = vcvt.s32.f32 %v855
  %v863 = vmul.f32 %v862, %v860
  %v864 = vxor.u32 %v863, 2147483648
  %v865 = vsel %vm782, %v864, %v863
  %v866 = vsub.s32 4, %v842
  %v867 = vsel %vm782, %v866, %v842
  %v868 = vsel %vm781, %v148, %v865
  %v869 = vsel %vm781, 0, %v867
  %v870 = vcosq.f32.pop %v868
  %v871 = vsinq.f32.pop %v868
  %vm872 = vweird.f32 %v148
  %v873 = vadd.s32 %v869, 3
  %v874 = vand.u32 %v873, 3
  %vm875 = vcmp.lt.s32.totalorder %v874, 2
  %vm876 = vcmp.eq.s32.totalorder %v874, 0
  %v877 = vxor.u32 %v871, 2147483648
  %v878 = vsel %vm876, %v870, %v877
  %vm879 = vcmp.eq.s32.totalorder %v874, 2
  %v880 = vxor.u32 %v870, 2147483648
  %v881 = vsel %vm879, %v880, %v871
  %v882 = vsel %vm875, %v878, %v881
  %v883 = vsel %vm872, nan, %v882
  %v884 = vand.u32 2147483647, %v153
  %vm885 = vcmp.le.f32.partialorder %v884, 0.7853982
  %vm886 = vcmp.lt.s32.totalorder %v153, 0
  %v887 = vand.u32 %v153, 2139095040
  %v888 = vshrl.u32 %v887, 23
  %v889 = vsub.s32 %v888, 127
  %v890 = vand.u32 2147483647, %v153
  %v891 = vand.u32 %v890, 8388607
  %v892 = vor.u32 %v891, 8388608
  %v893 = vsub.s32 0, %v892
  %v894 = vadd.s32 %v889, 1
  %vm895 = vcmp.gt.s32.totalorder %v894, 0
  %v896 = vsel %vm895, %v894, 0
  %v897 = vshrl.u32 %v896, 5
  %v898 = vand.u32 %v896, 31
  %v899 = vsub.s32 32, %v898
  %v900 = vshrl.u32 683565275, %v899
  %v901 = vshll.u32 683565275, %v898
  %v902 = vshrl.u32 2475754826, %v899
  %v903 = vor.u32 %v901, %v902
  %v904 = vshll.u32 2475754826, %v898
  %v905 = vshrl.u32 2131351028, %v899
  %v906 = vor.u32 %v904, %v905
  %v907 = vshll.u32 2131351028, %v898
  %v908 = vshrl.u32 2102212464, %v899
  %v909 = vor.u32 %v907, %v908
  %v910 = vshll.u32 2102212464, %v898
  %v911 = vshrl.u32 920167782, %v899
  %v912 = vor.u32 %v910, %v911
  %v913 = vshll.u32 920167782, %v898
  %v914 = vshrl.u32 1326507024, %v899
  %v915 = vor.u32 %v913, %v914
  %vm916 = vcmp.lt.s32.totalorder %v897, 1
  %vm917 = vcmp.lt.s32.totalorder %v897, 2
  %vm918 = vcmp.lt.s32.totalorder %v897, 3
  %vm919 = vcmp.lt.s32.totalorder %v897, 4
  %v920 = vsel %vm916, %v900, %v903
  %v921 = vsel %vm919, %v909, 2102212464
  %v922 = vsel %vm918, %v906, %v921
  %v923 = vsel %vm917, %v920, %v922
  %v924 = vsel %vm916, %v903, %v906
  %v925 = vsel %vm919, %v912, 920167782
  %v926 = vsel %vm918, %v909, %v925
  %v927 = vsel %vm917, %v924, %v926
  %v928 = vsel %vm916, %v906, %v909
  %v929 = vsel %vm919, %v915, 1326507024
  %v930 = vsel %vm918, %v912, %v929
  %v931 = vsel %vm917, %v928, %v930
  %v932 = vshll.u32 %v892, 8
  %v933 = vmul.u32.u64.compose %v932, %v931
  %v934 = vextract.low.u32 %v933
  %v935 = vextract.high.u32 %v933
  %v936 = vmul.u32.u64.compose %v932, %v927
  %v937 = vextract.low.u32 %v936
  %v938 = vextract.high.u32 %v936
  %v939 = vmul.u32 %v932, %v923
  %v940 = vadd.s32 %v935, %v937
  %vm941 = vc.u32 %v935, %v937
  %v942 = vadd.s32 %v938, 1
  %v943 = vsel %vm941, %v942, %v938
  %v944 = vadd.s32 %v939, %v943
  %v945 = vadd.s32 %v944, 536870912
  %v946 = vshrl.u32 %v945, 30
  %v947 = vshll.u32 %v946, 30
  %v948 = vsub.s32 %v944, %v947
  %vm949 = vcmp.lt.s32.totalorder %v948, 0
  %v950 = vsub.s32 0, %v948
  %v951 = vsel %vm949, %v950, %v948
  %v952 = vclz %v951
  %v953 = vsub.s32 %v952, 2
  %vm954 = vcmp.gt.s32.totalorder 0, %v953
  %v955 = vsel %vm954, 0, %v953
  %v956 = vsub.s32 32, %v955
  %v957 = vshll.u32 %v948, %v955
  %v958 = vshrl.u32 %v940, %v956
  %v959 = vor.u32 %v957, %v958
  %v960 = vsub.s32 4294967266, %v955
  %v961 = vadd.s32 %v960, 127
  %v962 = vshll.u32 %v961, 23
  %v963 = vor.u32 4788187, %v962
  %v964 = vand.u32 2147483647, %v963
  %v966 = vcvt.s32.f32 %v959
  %v967 = vmul.f32 %v966, %v964
  %v968 = vxor.u32 %v967, 2147483648
  %v969 = vsel %vm886, %v968, %v967
  %v970 = vsub.s32 4, %v946
  %v971 = vsel %vm886, %v970, %v946
  %v972 = vsel %vm885, %v153, %v969
  %v973 = vsel %vm885, 0, %v971
  %v974 = vcosq.f32.pop %v972
  %v975 = vsinq.f32.pop %v972
  %vm976 = vweird.f32 %v153
  %v977 = vadd.s32 %v973, 3
  %v978 = vand.u32 %v977, 3
  %vm979 = vcmp.lt.s32.totalorder %v978, 2
  %vm980 = vcmp.eq.s32.totalorder %v978, 0
  %v981 = vxor.u32 %v975, 2147483648
  %v982 = vsel %vm980, %v974, %v981
  %vm983 = vcmp.eq.s32.totalorder %v978, 2
  %v984 = vxor.u32 %v974, 2147483648
  %v985 = vsel %vm983, %v984, %v975
  %v986 = vsel %vm979, %v982, %v985
  %v987 = vsel %vm976, nan, %v986
  %v988 = vld [vmem:[%s3] sm:$0xff]
  %v989 = vld [vmem:[%s3 + $0x8] sm:$0xff]
  %v990 = vld [vmem:[%s3 + $0x10] sm:$0xff]
  %v991 = vld [vmem:[%s3 + $0x18] sm:$0xff]
  %v992 = vld [vmem:[%s3 + $0x20] sm:$0xff]
  %v993 = vld [vmem:[%s3 + $0x28] sm:$0xff]
  %v994 = vld [vmem:[%s3 + $0x30] sm:$0xff]
  %v995 = vld [vmem:[%s3 + $0x38] sm:$0xff]
  %v996 = vld [vmem:[%s3 + $0x40] sm:$0xff]
  %v997 = vld [vmem:[%s3 + $0x48] sm:$0xff]
  %v998 = vld [vmem:[%s3 + $0x50] sm:$0xff]
  %v999 = vld [vmem:[%s3 + $0x58] sm:$0xff]
  %v1000 = vld [vmem:[%s3 + $0x60] sm:$0xff]
  %v1001 = vld [vmem:[%s3 + $0x68] sm:$0xff]
  %v1002 = vld [vmem:[%s3 + $0x70] sm:$0xff]
  %v1003 = vld [vmem:[%s3 + $0x78] sm:$0xff]
  %v1004 = vld [vmem:[%s2] sm:$0xff]
  %1005 = vmatprep.subr.mxu0 0.0
  %1006 = vmatpush1.msra.mxu0 %v1004
  %1007 = vmatprep.subr.mxu0 0.0
  %1008 = vmatpush1.msra.mxu0 0.0
  %1009 = vmatprep.subr.mxu0 0.0
  %1010 = vmatpush1.msra.mxu0 0.0
  %1011 = vmatprep.subr.mxu0 0.0
  %1012 = vmatpush1.msra.mxu0 0.0
  %1013 = vmatprep.subr.mxu0 0.0
  %1014 = vmatpush1.msra.mxu0 0.0
  %1015 = vmatprep.subr.mxu0 0.0
  %1016 = vmatpush1.msra.mxu0 0.0
  %1017 = vmatprep.subr.mxu0 0.0
  %1018 = vmatpush1.msra.mxu0 0.0
  %1019 = vmatprep.subr.mxu0 0.0
  %1020 = vmatpush1.msra.mxu0 0.0
  %1021 = vmatprep.subr.mxu0 0.0
  %1022 = vmatpush1.msra.mxu0 0.0
  %1023 = vmatprep.subr.mxu0 0.0
  %1024 = vmatpush1.msra.mxu0 0.0
  %1025 = vmatprep.subr.mxu0 0.0
  %1026 = vmatpush1.msra.mxu0 0.0
  %1027 = vmatprep.subr.mxu0 0.0
  %1028 = vmatpush1.msra.mxu0 0.0
  %1029 = vmatprep.subr.mxu0 0.0
  %1030 = vmatpush1.msra.mxu0 0.0
  %1031 = vmatprep.subr.mxu0 0.0
  %1032 = vmatpush1.msra.mxu0 0.0
  %1033 = vmatprep.subr.mxu0 0.0
  %1034 = vmatpush1.msra.mxu0 0.0
  %1035 = vmatprep.subr.mxu0 0.0
  %1036 = vmatpush1.msra.mxu0 0.0
  %1037 = vmatprep.subr.mxu0 0.0
  %1038 = vmatpush1.msra.mxu0 0.0
  %1039 = vmatprep.subr.mxu0 0.0
  %1040 = vmatpush1.msra.mxu0 0.0
  %1041 = vmatprep.subr.mxu0 0.0
  %1042 = vmatpush1.msra.mxu0 0.0
  %1043 = vmatprep.subr.mxu0 0.0
  %1044 = vmatpush1.msra.mxu0 0.0
  %1045 = vmatprep.subr.mxu0 0.0
  %1046 = vmatpush1.msra.mxu0 0.0
  %1047 = vmatprep.subr.mxu0 0.0
  %1048 = vmatpush1.msra.mxu0 0.0
  %1049 = vmatprep.subr.mxu0 0.0
  %1050 = vmatpush1.msra.mxu0 0.0
  %1051 = vmatprep.subr.mxu0 0.0
  %1052 = vmatpush1.msra.mxu0 0.0
  %1053 = vmatprep.subr.mxu0 0.0
  %1054 = vmatpush1.msra.mxu0 0.0
  %1055 = vmatprep.subr.mxu0 0.0
  %1056 = vmatpush1.msra.mxu0 0.0
  %1057 = vmatprep.subr.mxu0 0.0
  %1058 = vmatpush1.msra.mxu0 0.0
  %1059 = vmatprep.subr.mxu0 0.0
  %1060 = vmatpush1.msra.mxu0 0.0
  %1061 = vmatprep.subr.mxu0 0.0
  %1062 = vmatpush1.msra.mxu0 0.0
  %1063 = vmatprep.subr.mxu0 0.0
  %1064 = vmatpush1.msra.mxu0 0.0
  %1065 = vmatprep.subr.mxu0 0.0
  %1066 = vmatpush1.msra.mxu0 0.0
  %1067 = vmatprep.subr.mxu0 0.0
  %1068 = vmatpush1.msra.mxu0 0.0
  %1069 = vmatprep.mubr.f32.mxu0 0.0
  %1070 = vmatmul.mubr.f32.gmra.mrb[0].mxu0 %v28
  %v1071 = vpop.f32.mrb[0].mxu0
  %v1072 = vadd.f32 0.0, %v1071
  %v1073 = vpop.f32.mrb[0].mxu0
  %1074 = vmatprep.mubr.f32.mxu0 0.0
  %1075 = vmatmul.mubr.f32.gmra.mrb[0].mxu0 %v31
  %v1076 = vpop.f32.mrb[0].mxu0
  %v1077 = vadd.f32 0.0, %v1076
  %v1078 = vpop.f32.mrb[0].mxu0
  %1079 = vmatprep.mubr.f32.mxu0 0.0
  %1080 = vmatmul.mubr.f32.gmra.mrb[0].mxu0 %v34
  %v1081 = vpop.f32.mrb[0].mxu0
  %v1082 = vadd.f32 0.0, %v1081
  %v1083 = vpop.f32.mrb[0].mxu0
  %1084 = vmatprep.mubr.f32.mxu0 0.0
  %1085 = vmatmul.mubr.f32.gmra.mrb[0].mxu0 %v37
  %v1086 = vpop.f32.mrb[0].mxu0
  %v1087 = vadd.f32 0.0, %v1086
  %v1088 = vpop.f32.mrb[0].mxu0
  %1089 = vmatprep.mubr.f32.mxu0 0.0
  %1090 = vmatmul.mubr.f32.gmra.mrb[0].mxu0 %v40
  %v1091 = vpop.f32.mrb[0].mxu0
  %v1092 = vadd.f32 0.0, %v1091
  %v1093 = vpop.f32.mrb[0].mxu0
  %1094 = vmatprep.mubr.f32.mxu0 0.0
  %1095 = vmatmul.mubr.f32.gmra.mrb[0].mxu0 %v43
  %v1096 = vpop.f32.mrb[0].mxu0
  %v1097 = vadd.f32 0.0, %v1096
  %v1098 = vpop.f32.mrb[0].mxu0
  %1099 = vmatprep.mubr.f32.mxu0 0.0
  %1100 = vmatmul.mubr.f32.gmra.mrb[0].mxu0 %v46
  %v1101 = vpop.f32.mrb[0].mxu0
  %v1102 = vadd.f32 0.0, %v1101
  %v1103 = vpop.f32.mrb[0].mxu0
  %1104 = vmatprep.mubr.f32.mxu0 0.0
  %1105 = vmatmul.mubr.f32.gmra.mrb[0].mxu0 %v49
  %v1106 = vpop.f32.mrb[0].mxu0
  %v1107 = vadd.f32 0.0, %v1106
  %v1108 = vpop.f32.mrb[0].mxu0
  %1109 = vdwg.mxu0
  %1110 = vmatprep.subr.mxu0 0.0
  %1111 = vmatpush1.msra.mxu0 %v988
  %1112 = vmatprep.subr.mxu0 0.0
  %1113 = vmatpush1.msra.mxu0 %v989
  %1114 = vmatprep.subr.mxu0 0.0
  %1115 = vmatpush1.msra.mxu0 %v990
  %1116 = vmatprep.subr.mxu0 0.0
  %1117 = vmatpush1.msra.mxu0 %v991
  %1118 = vmatprep.subr.mxu0 0.0
  %1119 = vmatpush1.msra.mxu0 %v992
  %1120 = vmatprep.subr.mxu0 0.0
  %1121 = vmatpush1.msra.mxu0 %v993
  %1122 = vmatprep.subr.mxu0 0.0
  %1123 = vmatpush1.msra.mxu0 %v994
  %1124 = vmatprep.subr.mxu0 0.0
  %1125 = vmatpush1.msra.mxu0 %v995
  %1126 = vmatprep.subr.mxu0 0.0
  %1127 = vmatpush1.msra.mxu0 %v996
  %1128 = vmatprep.subr.mxu0 0.0
  %1129 = vmatpush1.msra.mxu0 %v997
  %1130 = vmatprep.subr.mxu0 0.0
  %1131 = vmatpush1.msra.mxu0 %v998
  %1132 = vmatprep.subr.mxu0 0.0
  %1133 = vmatpush1.msra.mxu0 %v999
  %1134 = vmatprep.subr.mxu0 0.0
  %1135 = vmatpush1.msra.mxu0 %v1000
  %1136 = vmatprep.subr.mxu0 0.0
  %1137 = vmatpush1.msra.mxu0 %v1001
  %1138 = vmatprep.subr.mxu0 0.0
  %1139 = vmatpush1.msra.mxu0 %v1002
  %1140 = vmatprep.subr.mxu0 0.0
  %1141 = vmatpush1.msra.mxu0 %v1003
  %1142 = vmatprep.subr.mxu0 0.0
  %1143 = vmatpush1.msra.mxu0 0.0
  %1144 = vmatprep.subr.mxu0 0.0
  %1145 = vmatpush1.msra.mxu0 0.0
  %1146 = vmatprep.subr.mxu0 0.0
  %1147 = vmatpush1.msra.mxu0 0.0
  %1148 = vmatprep.subr.mxu0 0.0
  %1149 = vmatpush1.msra.mxu0 0.0
  %1150 = vmatprep.subr.mxu0 0.0
  %1151 = vmatpush1.msra.mxu0 0.0
  %1152 = vmatprep.subr.mxu0 0.0
  %1153 = vmatpush1.msra.mxu0 0.0
  %1154 = vmatprep.subr.mxu0 0.0
  %1155 = vmatpush1.msra.mxu0 0.0
  %1156 = vmatprep.subr.mxu0 0.0
  %1157 = vmatpush1.msra.mxu0 0.0
  %1158 = vmatprep.subr.mxu0 0.0
  %1159 = vmatpush1.msra.mxu0 0.0
  %1160 = vmatprep.subr.mxu0 0.0
  %1161 = vmatpush1.msra.mxu0 0.0
  %1162 = vmatprep.subr.mxu0 0.0
  %1163 = vmatpush1.msra.mxu0 0.0
  %1164 = vmatprep.subr.mxu0 0.0
  %1165 = vmatpush1.msra.mxu0 0.0
  %1166 = vmatprep.subr.mxu0 0.0
  %1167 = vmatpush1.msra.mxu0 0.0
  %1168 = vmatprep.subr.mxu0 0.0
  %1169 = vmatpush1.msra.mxu0 0.0
  %1170 = vmatprep.subr.mxu0 0.0
  %1171 = vmatpush1.msra.mxu0 0.0
  %1172 = vmatprep.subr.mxu0 0.0
  %1173 = vmatpush1.msra.mxu0 0.0
  %1174 = vmatprep.mubr.f32.mxu0 0.0
  %1175 = vmatmul.mubr.f32.gmra.mrb[0].mxu0 %v259
  %v1176 = vpop.f32.mrb[0].mxu0
  %v1177 = vadd.f32 %v1072, %v1176
  %v1178 = vpop.f32.mrb[0].mxu0
  %1179 = vmatprep.mubr.f32.mxu0 0.0
  %1180 = vmatmul.mubr.f32.gmra.mrb[0].mxu0 %v363
  %v1181 = vpop.f32.mrb[0].mxu0
  %v1182 = vadd.f32 %v1077, %v1181
  %v1183 = vpop.f32.mrb[0].mxu0
  %1184 = vmatprep.mubr.f32.mxu0 0.0
  %1185 = vmatmul.mubr.f32.gmra.mrb[0].mxu0 %v467
  %v1186 = vpop.f32.mrb[0].mxu0
  %v1187 = vadd.f32 %v1082, %v1186
  %v1188 = vpop.f32.mrb[0].mxu0
  %1189 = vmatprep.mubr.f32.mxu0 0.0
  %1190 = vmatmul.mubr.f32.gmra.mrb[0].mxu0 %v571
  %v1191 = vpop.f32.mrb[0].mxu0
  %v1192 = vadd.f32 %v1087, %v1191
  %v1193 = vpop.f32.mrb[0].mxu0
  %1194 = vmatprep.mubr.f32.mxu0 0.0
  %1195 = vmatmul.mubr.f32.gmra.mrb[0].mxu0 %v675
  %v1196 = vpop.f32.mrb[0].mxu0
  %v1197 = vadd.f32 %v1092, %v1196
  %v1198 = vpop.f32.mrb[0].mxu0
  %1199 = vmatprep.mubr.f32.mxu0 0.0
  %1200 = vmatmul.mubr.f32.gmra.mrb[0].mxu0 %v779
  %v1201 = vpop.f32.mrb[0].mxu0
  %v1202 = vadd.f32 %v1097, %v1201
  %v1203 = vpop.f32.mrb[0].mxu0
  %1204 = vmatprep.mubr.f32.mxu0 0.0
  %1205 = vmatmul.mubr.f32.gmra.mrb[0].mxu0 %v883
  %v1206 = vpop.f32.mrb[0].mxu0
  %v1207 = vadd.f32 %v1102, %v1206
  %v1208 = vpop.f32.mrb[0].mxu0
  %1209 = vmatprep.mubr.f32.mxu0 0.0
  %1210 = vmatmul.mubr.f32.gmra.mrb[0].mxu0 %v987
  %v1211 = vpop.f32.mrb[0].mxu0
  %v1212 = vadd.f32 %v1107, %v1211
  %v1213 = vpop.f32.mrb[0].mxu0
  %1214 = vdwg.mxu0
  %1215 = vst [vmem:[%s4] sm:$0xff] %v1177
  %1216 = vst [vmem:[%s4 + $0x8] sm:$0xff] %v1182
  %1217 = vst [vmem:[%s4 + $0x10] sm:$0xff] %v1187
  %1218 = vst [vmem:[%s4 + $0x18] sm:$0xff] %v1192
  %1219 = vst [vmem:[%s4 + $0x20] sm:$0xff] %v1197
  %1220 = vst [vmem:[%s4 + $0x28] sm:$0xff] %v1202
  %1221 = vst [vmem:[%s4 + $0x30] sm:$0xff] %v1207
  %1222 = vst [vmem:[%s4 + $0x38] sm:$0xff] %v1212
  // Predicated region
  $region18: #{sine_encoding.1} parent=0 // pred_check
    _
  $region19: #{sine_encoding.1} parent=0 // pred_check_branch
    %1224 = sbr.rel (0) target = $region21
  $region20: #{sine_encoding.1} parent=0 // pred_region
    _
  $region21: #{sine_encoding.1} parent=0 // pred_fallthru
    _
  // Predicated region
  $region22: #{sine_encoding.1} parent=0 // pred_check
    _
  $region23: #{sine_encoding.1} parent=0 // pred_check_branch
    %1226 = sbr.rel (0) target = $region25
  $region24: #{sine_encoding.1} parent=0 // pred_region
    _
  $region25: #{sine_encoding.1} parent=0 // pred_fallthru
    _

</llo_original>
